<compile_context>
chip_gen: v7x
topology: tpu7x:2x2x1
jax: 0.10.0
libtpu: 0.0.40
codegen_flags: <defaults>
</compile_context>

<pallas_src>
import jax
import jax.numpy as jnp
from jax.experimental import pallas as pl
from jax.experimental.pallas import tpu as pltpu


def _add_bias_kernel(x_ref, b_ref, o_ref):
    # x_ref: (TM, L) tile in VMEM.
    # b_ref: (1, L) row bias  OR  (TM, 1) column bias — jnp broadcasting
    # handles both orientations with the same body.  Pure VPU add.
    o_ref[...] = x_ref[...] + b_ref[...]


def _choose_tm(M, L, itemsize, target_bytes=2 * 1024 * 1024):
    """Rows per block: multiple of 8 (or full M), ~target_bytes per buffer."""
    if M <= 8:
        return M
    rows = target_bytes // max(1, L * itemsize)
    rows = (rows // 8) * 8
    rows = max(8, min(rows, 1024))
    if rows >= M:
        return M          # full extent is always a legal block dim
    return rows           # multiple of 8; edge blocks handled by Pallas


def _add_bias_2d(x2d, bias2d):
    """x2d: (M, L); bias2d: (1, L) or (M, 1). Returns x2d + bias2d."""
    M, L = x2d.shape
    TM = _choose_tm(M, L, x2d.dtype.itemsize)
    grid = (pl.cdiv(M, TM),)

    if bias2d.shape == (1, L):
        # Row bias: stays VMEM-resident across the whole grid.
        bias_spec = pl.BlockSpec((1, L), lambda i: (0, 0))
    else:
        # Column bias: tiled along rows in lockstep with x.
        bias_spec = pl.BlockSpec((TM, 1), lambda i: (i, 0))

    return pl.pallas_call(
        _add_bias_kernel,
        out_shape=jax.ShapeDtypeStruct((M, L), x2d.dtype),
        grid=grid,
        in_specs=[
            pl.BlockSpec((TM, L), lambda i: (i, 0)),
            bias_spec,
        ],
        out_specs=pl.BlockSpec((TM, L), lambda i: (i, 0)),
        compiler_params=pltpu.CompilerParams(
            dimension_semantics=("parallel",),
        ),
        # NOTE: callers that can donate x may add input_output_aliases={0: 0}
        # to reuse x's HBM buffer; omitted here to keep the wrapper general.
    )(x2d, bias2d)


def add_bias(x, bias):
    """Equivalent of AddBias(bias).forward(x).

    bias: (C,) parameter values (PyTorch stores (C, 1); same information).
    x: (N, C) or (N, C, H, W) — NCHW convention, like PyTorch.
    """
    bias = bias.reshape(-1).astype(x.dtype)  # (C,)
    C = bias.shape[0]

    if x.ndim == 2:
        assert x.shape[1] == C, "channel mismatch"
        # Channel is already the lane axis: broadcast a (1, C) row.
        return _add_bias_2d(x, bias.reshape(1, C))

    elif x.ndim == 4:
        N, Cx, H, W = x.shape
        assert Cx == C, "channel mismatch"
        # (N, C, H, W) -> (N*C, H*W): contiguous reshape, no data movement.
        # Lane axis = H*W (lane-dense); bias becomes a per-row column.
        x2 = x.reshape(N * C, H * W)
        bias_col = jnp.tile(bias.reshape(C, 1), (N, 1))  # (N*C, 1), tiny
        y = _add_bias_2d(x2, bias_col)
        return y.reshape(N, C, H, W)

    else:
        raise ValueError(f"AddBias expects 2-D or 4-D input, got {x.ndim}-D")


if __name__ == "__main__":
    key = jax.random.PRNGKey(0)
    k_x4, k_x2 = jax.random.split(key, 2)

    N, C, H, W = 2, 4, 16, 16
    # Deterministic parameter init (PyTorch __init__ takes `bias` of shape (C,)).
    bias = (jnp.arange(C, dtype=jnp.float32) * 0.1) - 0.15  # (C,)

    # 4-D (NCHW) path
    x4 = jax.random.normal(k_x4, (N, C, H, W), dtype=jnp.float32)
    y4 = jax.block_until_ready(add_bias(x4, bias))
    ref4 = x4 + bias.reshape(1, C, 1, 1)
    assert y4.shape == x4.shape and y4.dtype == x4.dtype
    assert jnp.allclose(y4, ref4, atol=1e-6), "4-D AddBias mismatch"

    # 2-D path
    x2 = jax.random.normal(k_x2, (N, C), dtype=jnp.float32)
    y2 = jax.block_until_ready(add_bias(x2, bias))
    ref2 = x2 + bias.reshape(1, C)
    assert y2.shape == x2.shape and y2.dtype == x2.dtype
    assert jnp.allclose(y2, ref2, atol=1e-6), "2-D AddBias mismatch"

    # Larger row-tiled sanity check (exercises the multi-block grid path).
    xl = jax.random.normal(key, (4, C, 64, 64), dtype=jnp.float32)
    yl = jax.block_until_ready(add_bias(xl, bias))
    refl = xl + bias.reshape(1, C, 1, 1)
    assert jnp.allclose(yl, refl, atol=1e-6), "tiled AddBias mismatch"

    print("KERNEL_OK")
</pallas_src>

<mosaic_0001>
module attributes {stable_mosaic.version = 11 : i64} {
  func.func @_add_bias_kernel(%arg0: i32, %arg1: memref<8x256xf32, #tpu.memory_space<vmem>>, %arg2: memref<8x1xf32, #tpu.memory_space<vmem>>, %arg3: memref<8x256xf32, #tpu.memory_space<vmem>>) attributes {dimension_semantics = [#tpu.dimension_semantics<parallel>], iteration_bounds = array<i64: 1>, scalar_prefetch = 0 : i64, scratch_operands = 0 : i64, tpu.core_type = #tpu.core_type<tc>, window_params = [{transform_indices = @transform_0, window_bounds = array<i64: 8, 256>}, {transform_indices = @transform_1, window_bounds = array<i64: 8, 1>}, {transform_indices = @transform_2, window_bounds = array<i64: 8, 256>}]} {
    %c0 = arith.constant 0 : index
    %c0_0 = arith.constant 0 : index
    %0 = vector.load %arg1[%c0, %c0_0] : memref<8x256xf32, #tpu.memory_space<vmem>>, vector<8x256xf32>
    %c0_1 = arith.constant 0 : index
    %c0_2 = arith.constant 0 : index
    %1 = vector.load %arg2[%c0_1, %c0_2] : memref<8x1xf32, #tpu.memory_space<vmem>>, vector<8x1xf32>
    %2 = vector.broadcast %1 : vector<8x1xf32> to vector<8x256xf32>
    %3 = arith.addf %0, %2 : vector<8x256xf32>
    %c0_3 = arith.constant 0 : index
    %c0_4 = arith.constant 0 : index
    %4 = vector.load %arg3[%c0_3, %c0_4] : memref<8x256xf32, #tpu.memory_space<vmem>>, vector<8x256xf32>
    tpu.vector_store %arg3[%c0_3, %c0_4], %3 {strides = array<i32>} : memref<8x256xf32, #tpu.memory_space<vmem>>, vector<8x256xf32>,
    return
  }
  func.func @transform_0(%arg0: i32) -> (i32, i32) {
    %c0_i32 = arith.constant 0 : i32
    %c0_i32_0 = arith.constant 0 : i32
    return %arg0, %c0_i32 : i32, i32
  }
  func.func @transform_1(%arg0: i32) -> (i32, i32) {
    %c0_i32 = arith.constant 0 : i32
    %c0_i32_0 = arith.constant 0 : i32
    return %arg0, %c0_i32 : i32, i32
  }
  func.func @transform_2(%arg0: i32) -> (i32, i32) {
    %c0_i32 = arith.constant 0 : i32
    %c0_i32_0 = arith.constant 0 : i32
    return %arg0, %c0_i32 : i32, i32
  }
}

</mosaic_0001>

<llo_original>
// kernel: tpu_custom_call.1
$region0: #{tpu_custom_call.1}
  #allocation0 [shape = 'u32[]', space=smem, size = 0x4, offset = 0x4, fixed_abs, tag = 'smem constant byte address 0x4 - core index']
  #allocation1 [shape = 'u32[144,128]{1,0:T(1,128)}', space=vmem, size = 0x12000, scoped, tag = 'internal scratch']
  %s0 = inlined_call_operand.hbm [shape: f32[8,256], index: 0, kind: input, shape index: {}]
  %s1 = inlined_call_operand.vmem [shape: f32[8,1], index: 1, kind: input, shape index: {}]
  %s2 = inlined_call_operand.hbm [shape: f32[8,256], index: 2, kind: output, shape index: {}]
  %s3 = sld [smem:[#allocation0]]
  $region22: #{tpu_custom_call.1} parent=0
    _
  %s5 = ssub.s32 1, %s3
  %s6 = scalar_select 0, %s5, %s3
  $region1: #{tpu_custom_call.1} parent=0
    #allocation2 [shape = 'u8[8192]{0}', space=vmem, size = 0x2000, scoped, tag = 'input window, operand 0, single buffered']
    #allocation3 [shape = 's32[1]{0}', space=sflag, size = 0x4, scoped, tag = 'scoped memory for tpu_custom_call.1']
    #allocation4 [shape = 's32[1]{0}', space=sflag, size = 0x4, scoped, tag = 'scoped memory for tpu_custom_call.1']
    #allocation5 [shape = 'u8[8192]{0}', space=vmem, size = 0x2000, scoped, tag = 'output window, operand 0, single buffered']
    %7 = vsyncpa [#allocation3], 0
    %8 = vsyncpa [#allocation4], 0
    // Predicated region
    $region2: #{tpu_custom_call.1} parent=1 // pred_check
      _
    $region3: #{tpu_custom_call.1} parent=1 // pred_check_branch
      %10 = sbr.rel (0) target = $region5
    $region4: #{tpu_custom_call.1} parent=1 // pred_region
      %s12 = ssub.s32 256, 256
      %13 = vsyncadd [#allocation3], %s12
      %s15 = sshll.u32 [#allocation2], 4
      %s16 = int_to_ptr.vmem [resolvable:$true] %s15
      %18 = dma.hbm_to_vmem [thread:$0]  %s0, 256, %s16, [#allocation3]
    $region5: #{tpu_custom_call.1} parent=1 // pred_fallthru
      _
    // Predicated region
    $region6: #{tpu_custom_call.1} parent=1 // pred_check
      _
    $region7: #{tpu_custom_call.1} parent=1 // pred_check_branch
      %20 = sbr.rel (0) target = $region9
    $region8: #{tpu_custom_call.1} parent=1 // pred_region
      _
    $region9: #{tpu_custom_call.1} parent=1 // pred_fallthru
      _
    // Predicated region
    $region10: #{tpu_custom_call.1} parent=1 // pred_check
      _
    $region11: #{tpu_custom_call.1} parent=1 // pred_check_branch
      %22 = sbr.rel (0) target = $region13
    $region12: #{tpu_custom_call.1} parent=1 // pred_region
      %23 = dma.done [#allocation3], 256
    $region13: #{tpu_custom_call.1} parent=1 // pred_fallthru
      _
    %v24 = vld [vmem:[#allocation2] sm:$0xff]
    %v25 = vld [vmem:[#allocation2 + $0x8] sm:$0xff]
    %v26 = vld [vmem:[%s1] sm:$0xff]
    %28 = vset.pattern.permute.xlu0 0
    %29 = vperm.xlu0 %28, %v26
    %v30 = vpop.permute.xlu0 %29
    %v32 = vadd.f32 %v24, %v30
    %v33 = vadd.f32 %v25, %v30
    %34 = vst [vmem:[#allocation5] sm:$0xff] %v32
    %35 = vst [vmem:[#allocation5 + $0x8] sm:$0xff] %v33
    // Predicated region
    $region14: #{tpu_custom_call.1} parent=1 // pred_check
      _
    $region15: #{tpu_custom_call.1} parent=1 // pred_check_branch
      %37 = sbr.rel (0) target = $region17
    $region16: #{tpu_custom_call.1} parent=1 // pred_region
      %s39 = ssub.s32 256, 256
      %40 = vsyncadd [#allocation4], %s39
      %s42 = sshll.u32 [#allocation5], 4
      %s43 = int_to_ptr.vmem [resolvable:$true] %s42
      %45 = dma.vmem_to_hbm [thread:$0]  %s43, 256, %s2, [#allocation4]
    $region17: #{tpu_custom_call.1} parent=1 // pred_fallthru
      _
    // Predicated region
    $region18: #{tpu_custom_call.1} parent=1 // pred_check
      _
    $region19: #{tpu_custom_call.1} parent=1 // pred_check_branch
      %47 = sbr.rel (0) target = $region21
    $region20: #{tpu_custom_call.1} parent=1 // pred_region
      %48 = dma.done [#allocation4], 256
    $region21: #{tpu_custom_call.1} parent=1 // pred_fallthru
      _
    %49 = vsyncpa [#allocation3], 1
    %50 = vsyncpa [#allocation4], 1

</llo_original>
